<compile_context>
chip_gen: v6e
topology: v6e:2x2x1
jax: 0.10.0
libtpu: 0.0.40
codegen_flags: <defaults>
</compile_context>

<pallas_src>
import jax
import jax.numpy as jnp
from jax.experimental import pallas as pl
from jax.experimental.pallas import tpu as pltpu


# Matches the PyTorch module's `self.noise = 1e-06` clamp lower bound.
_NOISE = 1e-6


def _round_up(x, m):
    return ((x + m - 1) // m) * m


def actor_forward_kernel(x_ref, w1_ref, w2_ref, wh_ref, b_ref, out_ref):
    """Fused forward pass for one batch tile.

    x_ref:  [TB, S]
    w1_ref: [S, H]          w2_ref: [H, H]        wh_ref: [H, 2A]  (mean || sigma)
    b_ref:  [3, max(H, 2A)] rows = (b1, b2, b_heads-padded)
    out_ref:[TB, 2A]        columns [:A] = mean, [A:] = clamped std
    """
    H = w2_ref.shape[1]
    A2 = wh_ref.shape[1]
    A = A2 // 2

    x = x_ref[...]
    b1 = b_ref[0:1, :H]          # [1, H]
    b2 = b_ref[1:2, :H]          # [1, H]
    bh = b_ref[2:3, :A2]         # [1, 2A]

    # fc1 + ReLU
    h1 = jnp.dot(x, w1_ref[...], preferred_element_type=jnp.float32) + b1
    h1 = jnp.maximum(h1, 0.0)

    # fc2 + ReLU
    h2 = jnp.dot(h1, w2_ref[...], preferred_element_type=jnp.float32) + b2
    h2 = jnp.maximum(h2, 0.0)

    # fused mean/sigma heads: one matmul, one store
    heads = jnp.dot(h2, wh_ref[...], preferred_element_type=jnp.float32) + bh

    # clamp only the sigma half (columns >= A) to [noise, 1]
    col = jax.lax.broadcasted_iota(jnp.int32, heads.shape, dimension=1)
    clamped = jnp.clip(heads, _NOISE, 1.0)
    out_ref[...] = jnp.where(col >= A, clamped, heads).astype(out_ref.dtype)


def actor_forward(x, params, *, block_b=256):
    """Run the fused actor kernel.

    x: [B, state_dim] float32
    params: dict with "w1" [S,H], "w2" [H,H], "wh" [H,2A], "b_all" [3, max(H,2A)]
    Returns (mean, std), each [B, action_dim].
    """
    B, S = x.shape
    H = params["w2"].shape[1]
    A2 = params["wh"].shape[1]
    A = A2 // 2

    # Batch tile: multiple of the f32 sublane count (8). Weights are ~80 KiB so
    # even a few thousand rows per tile fits the 64 MiB v7x VMEM with room for
    # double buffering; 256 is a safe default everywhere.
    TB = min(block_b, _round_up(B, 8))
    Bp = _round_up(B, TB)
    if Bp != B:
        x = jnp.pad(x, ((0, Bp - B), (0, 0)))

    grid = (pl.cdiv(Bp, TB),)

    out = pl.pallas_call(
        actor_forward_kernel,
        grid=grid,
        in_specs=[
            pl.BlockSpec((TB, S), lambda i: (i, 0)),                 # x: tiled over batch
            pl.BlockSpec(params["w1"].shape, lambda i: (0, 0)),      # weights stay resident
            pl.BlockSpec(params["w2"].shape, lambda i: (0, 0)),
            pl.BlockSpec(params["wh"].shape, lambda i: (0, 0)),
            pl.BlockSpec(params["b_all"].shape, lambda i: (0, 0)),
        ],
        out_specs=pl.BlockSpec((TB, A2), lambda i: (i, 0)),
        out_shape=jax.ShapeDtypeStruct((Bp, A2), jnp.float32),
        compiler_params=pltpu.CompilerParams(
            dimension_semantics=("parallel",),  # lets v7x shard batch across its 2 TCs
        ),
    )(x, params["w1"], params["w2"], params["wh"], params["b_all"])

    out = out[:B]
    return out[:, :A], out[:, A:]


def pack_actor_params(w1, b1, w2, b2, wm, bm, ws, bs):
    """Pack raw per-layer weights into the fused/packed layout used by the kernel."""
    hidden = w1.shape[1]
    a2 = 2 * wm.shape[1]
    width = max(hidden, a2)

    wh = jnp.concatenate([wm, ws], axis=1)                       # [H, 2A]
    b_all = jnp.zeros((3, width), jnp.float32)
    b_all = b_all.at[0, :hidden].set(b1)
    b_all = b_all.at[1, :hidden].set(b2)
    b_all = b_all.at[2, :a2].set(jnp.concatenate([bm, bs]))
    return {"w1": w1, "w2": w2, "wh": wh, "b_all": b_all}


def init_actor_params(key, state_dim, action_dim, hidden=128):
    """Deterministic init matching init_weights: N(0, 0.01) for weights and biases."""
    ks = jax.random.split(key, 8)
    std = 0.01

    def rnd(k, shape):
        return jax.random.normal(k, shape, dtype=jnp.float32) * std

    w1 = rnd(ks[0], (state_dim, hidden))
    b1 = rnd(ks[1], (hidden,))
    w2 = rnd(ks[2], (hidden, hidden))
    b2 = rnd(ks[3], (hidden,))
    wm = rnd(ks[4], (hidden, action_dim))
    bm = rnd(ks[5], (action_dim,))
    ws = rnd(ks[6], (hidden, action_dim))
    bs = rnd(ks[7], (action_dim,))
    return pack_actor_params(w1, b1, w2, b2, wm, bm, ws, bs)


def actor_forward_ref(x, params):
    """Pure-JAX reference for correctness check (same packed params)."""
    H = params["w2"].shape[1]
    A2 = params["wh"].shape[1]
    A = A2 // 2
    b1 = params["b_all"][0, :H]
    b2 = params["b_all"][1, :H]
    bh = params["b_all"][2, :A2]

    h1 = jnp.maximum(x @ params["w1"] + b1, 0.0)
    h2 = jnp.maximum(h1 @ params["w2"] + b2, 0.0)
    heads = h2 @ params["wh"] + bh
    mean = heads[:, :A]
    std = jnp.clip(heads[:, A:], _NOISE, 1.0)
    return mean, std


if __name__ == "__main__":
    key = jax.random.PRNGKey(0)
    k_params, k_x = jax.random.split(key)

    B = 2
    state_dim = 8
    action_dim = 4  # action_min/action_max have 4 entries in the PyTorch module

    params = init_actor_params(k_params, state_dim, action_dim)
    x = jax.random.normal(k_x, (B, state_dim), dtype=jnp.float32)

    mean, std = actor_forward(x, params)
    jax.block_until_ready((mean, std))

    mean_ref, std_ref = actor_forward_ref(x, params)
    assert mean.shape == (B, action_dim) and std.shape == (B, action_dim)
    assert jnp.allclose(mean, mean_ref, atol=1e-5, rtol=1e-5)
    assert jnp.allclose(std, std_ref, atol=1e-5, rtol=1e-5)
    assert bool(jnp.all(std >= _NOISE)) and bool(jnp.all(std <= 1.0))

    print("KERNEL_OK")
</pallas_src>

<mosaic_0001>
module attributes {stable_mosaic.version = 11 : i64} {
  func.func @actor_forward_kernel(%arg0: i32, %arg1: memref<8x8xf32, #tpu.memory_space<vmem>>, %arg2: memref<8x128xf32, #tpu.memory_space<vmem>>, %arg3: memref<128x128xf32, #tpu.memory_space<vmem>>, %arg4: memref<128x8xf32, #tpu.memory_space<vmem>>, %arg5: memref<3x128xf32, #tpu.memory_space<vmem>>, %arg6: memref<8x8xf32, #tpu.memory_space<vmem>>) attributes {dimension_semantics = [#tpu.dimension_semantics<parallel>], iteration_bounds = array<i64: 1>, scalar_prefetch = 0 : i64, scratch_operands = 0 : i64, tpu.core_type = #tpu.core_type<tc>, window_params = [{transform_indices = @transform_0, window_bounds = array<i64: 8, 8>}, {pipeline_mode = #tpu.pipeline_mode<synchronous>, transform_indices = @transform_1, window_bounds = array<i64: 8, 128>}, {pipeline_mode = #tpu.pipeline_mode<synchronous>, transform_indices = @transform_2, window_bounds = array<i64: 128, 128>}, {pipeline_mode = #tpu.pipeline_mode<synchronous>, transform_indices = @transform_3, window_bounds = array<i64: 128, 8>}, {pipeline_mode = #tpu.pipeline_mode<synchronous>, transform_indices = @transform_4, window_bounds = array<i64: 3, 128>}, {transform_indices = @transform_5, window_bounds = array<i64: 8, 8>}]} {
    %c0 = arith.constant 0 : index
    %c0_0 = arith.constant 0 : index
    %0 = vector.load %arg1[%c0, %c0_0] : memref<8x8xf32, #tpu.memory_space<vmem>>, vector<8x8xf32>
    %c0_1 = arith.constant 0 : index
    %c0_2 = arith.constant 0 : index
    %1 = vector.load %arg5[%c0_1, %c0_2] : memref<3x128xf32, #tpu.memory_space<vmem>>, vector<1x128xf32>
    %c1 = arith.constant 1 : index
    %c0_3 = arith.constant 0 : index
    %2 = vector.load %arg5[%c1, %c0_3] : memref<3x128xf32, #tpu.memory_space<vmem>>, vector<1x128xf32>
    %c2 = arith.constant 2 : index
    %c0_4 = arith.constant 0 : index
    %3 = vector.load %arg5[%c2, %c0_4] : memref<3x128xf32, #tpu.memory_space<vmem>>, vector<1x8xf32>
    %c0_5 = arith.constant 0 : index
    %c0_6 = arith.constant 0 : index
    %4 = vector.load %arg2[%c0_5, %c0_6] : memref<8x128xf32, #tpu.memory_space<vmem>>, vector<8x128xf32>
    %cst = arith.constant dense<0.000000e+00> : vector<8x128xf32>
    %5 = tpu.matmul %0, %4, %cst {dimension_numbers = #tpu.dot_dimension_numbers<[1], [0], [0], [1], [0, 0, 1, 1], [], []>} : vector<8x8xf32>, vector<8x128xf32>, vector<8x128xf32> -> vector<8x128xf32>
    %6 = vector.broadcast %1 : vector<1x128xf32> to vector<8x128xf32>
    %7 = arith.addf %5, %6 : vector<8x128xf32>
    %cst_7 = arith.constant 0.000000e+00 : f32
    %8 = vector.broadcast %cst_7 : f32 to vector<8x128xf32>
    %9 = arith.maximumf %7, %8 : vector<8x128xf32>
    %c0_8 = arith.constant 0 : index
    %c0_9 = arith.constant 0 : index
    %10 = vector.load %arg3[%c0_8, %c0_9] : memref<128x128xf32, #tpu.memory_space<vmem>>, vector<128x128xf32>
    %cst_10 = arith.constant dense<0.000000e+00> : vector<8x128xf32>
    %11 = tpu.matmul %9, %10, %cst_10 {dimension_numbers = #tpu.dot_dimension_numbers<[1], [0], [0], [1], [0, 0, 1, 1], [], []>} : vector<8x128xf32>, vector<128x128xf32>, vector<8x128xf32> -> vector<8x128xf32>
    %12 = vector.broadcast %2 : vector<1x128xf32> to vector<8x128xf32>
    %13 = arith.addf %11, %12 : vector<8x128xf32>
    %cst_11 = arith.constant 0.000000e+00 : f32
    %14 = vector.broadcast %cst_11 : f32 to vector<8x128xf32>
    %15 = arith.maximumf %13, %14 : vector<8x128xf32>
    %c0_12 = arith.constant 0 : index
    %c0_13 = arith.constant 0 : index
    %16 = vector.load %arg4[%c0_12, %c0_13] : memref<128x8xf32, #tpu.memory_space<vmem>>, vector<128x8xf32>
    %cst_14 = arith.constant dense<0.000000e+00> : vector<8x8xf32>
    %17 = tpu.matmul %15, %16, %cst_14 {dimension_numbers = #tpu.dot_dimension_numbers<[1], [0], [0], [1], [0, 0, 1, 1], [], []>} : vector<8x128xf32>, vector<128x8xf32>, vector<8x8xf32> -> vector<8x8xf32>
    %18 = vector.broadcast %3 : vector<1x8xf32> to vector<8x8xf32>
    %19 = arith.addf %17, %18 : vector<8x8xf32>
    %20 = tpu.iota {dimensions = array<i32: 1>} : vector<8x8xi32>
    %cst_15 = arith.constant 9.99999997E-7 : f32
    %cst_16 = arith.constant 1.000000e+00 : f32
    %21 = vector.broadcast %cst_15 : f32 to vector<8x8xf32>
    %22 = arith.maximumf %21, %19 : vector<8x8xf32>
    %23 = vector.broadcast %cst_16 : f32 to vector<8x8xf32>
    %24 = arith.minimumf %23, %22 : vector<8x8xf32>
    %c4_i32 = arith.constant 4 : i32
    %25 = vector.broadcast %c4_i32 : i32 to vector<8x8xi32>
    %26 = arith.cmpi sge, %20, %25 : vector<8x8xi32>
    %27 = arith.select %26, %24, %19 : vector<8x8xi1>, vector<8x8xf32>
    %c0_17 = arith.constant 0 : index
    %c0_18 = arith.constant 0 : index
    %28 = vector.load %arg6[%c0_17, %c0_18] : memref<8x8xf32, #tpu.memory_space<vmem>>, vector<8x8xf32>
    tpu.vector_store %arg6[%c0_17, %c0_18], %27 {strides = array<i32>} : memref<8x8xf32, #tpu.memory_space<vmem>>, vector<8x8xf32>,
    return
  }
  func.func @transform_0(%arg0: i32) -> (i32, i32) {
    %c0_i32 = arith.constant 0 : i32
    %c0_i32_0 = arith.constant 0 : i32
    return %arg0, %c0_i32 : i32, i32
  }
  func.func @transform_1(%arg0: i32) -> (i32, i32) {
    %c0_i32 = arith.constant 0 : i32
    %c0_i32_0 = arith.constant 0 : i32
    %c0_i32_1 = arith.constant 0 : i32
    return %c0_i32, %c0_i32_0 : i32, i32
  }
  func.func @transform_2(%arg0: i32) -> (i32, i32) {
    %c0_i32 = arith.constant 0 : i32
    %c0_i32_0 = arith.constant 0 : i32
    %c0_i32_1 = arith.constant 0 : i32
    return %c0_i32, %c0_i32_0 : i32, i32
  }
  func.func @transform_3(%arg0: i32) -> (i32, i32) {
    %c0_i32 = arith.constant 0 : i32
    %c0_i32_0 = arith.constant 0 : i32
    %c0_i32_1 = arith.constant 0 : i32
    return %c0_i32, %c0_i32_0 : i32, i32
  }
  func.func @transform_4(%arg0: i32) -> (i32, i32) {
    %c0_i32 = arith.constant 0 : i32
    %c0_i32_0 = arith.constant 0 : i32
    %c0_i32_1 = arith.constant 0 : i32
    return %c0_i32, %c0_i32_0 : i32, i32
  }
  func.func @transform_5(%arg0: i32) -> (i32, i32) {
    %c0_i32 = arith.constant 0 : i32
    %c0_i32_0 = arith.constant 0 : i32
    return %arg0, %c0_i32 : i32, i32
  }
}

</mosaic_0001>

<llo_original>
// kernel: tpu_custom_call.1
$region0: #{tpu_custom_call.1}
  #allocation0 [shape = 'u32[]', space=smem, size = 0x4, offset = 0x4, fixed_abs, tag = 'smem constant byte address 0x4 - core index']
  #allocation1 [shape = 'u32[144,128]{1,0:T(1,128)}', space=vmem, size = 0x12000, scoped, tag = 'internal scratch']
  %s0 = inlined_call_operand.vmem [shape: f32[8,8], index: 0, kind: input, shape index: {}]
  %s1 = inlined_call_operand.hbm [shape: f32[8,128], index: 1, kind: input, shape index: {}]
  %s2 = inlined_call_operand.vmem [shape: f32[128,128], index: 2, kind: input, shape index: {}]
  %s3 = inlined_call_operand.vmem [shape: f32[128,8], index: 3, kind: input, shape index: {}]
  %s4 = inlined_call_operand.vmem [shape: f32[3,128], index: 4, kind: input, shape index: {}]
  %s5 = inlined_call_operand.hbm [shape: f32[8,8], index: 5, kind: output, shape index: {}]
  %s6 = sld [smem:[#allocation0]]
  $region34: #{tpu_custom_call.1} parent=0
    _
  %s8 = ssub.s32 1, %s6
  %s9 = scalar_select 0, %s8, %s6
  $region1: #{tpu_custom_call.1} parent=0
    #allocation2 [shape = 'u8[4096]{0}', space=vmem, size = 0x1000, scoped, tag = 'input window, operand 1, single buffered']
    #allocation3 [shape = 's32[1]{0}', space=sflag, size = 0x4, scoped, tag = 'scoped memory for tpu_custom_call.1']
    #allocation4 [shape = 's32[1]{0}', space=sflag, size = 0x4, scoped, tag = 'scoped memory for tpu_custom_call.1']
    #allocation5 [shape = 'u8[4096]{0}', space=vmem, size = 0x1000, scoped, tag = 'output window, operand 0, single buffered']
    %10 = vsyncpa [#allocation3], 0
    %11 = vsyncpa [#allocation4], 0
    // Predicated region
    $region2: #{tpu_custom_call.1} parent=1 // pred_check
      _
    $region3: #{tpu_custom_call.1} parent=1 // pred_check_branch
      %13 = sbr.rel (0) target = $region5
    $region4: #{tpu_custom_call.1} parent=1 // pred_region
      _
    $region5: #{tpu_custom_call.1} parent=1 // pred_fallthru
      _
    // Predicated region
    $region6: #{tpu_custom_call.1} parent=1 // pred_check
      _
    $region7: #{tpu_custom_call.1} parent=1 // pred_check_branch
      %15 = sbr.rel (0) target = $region9
    $region8: #{tpu_custom_call.1} parent=1 // pred_region
      %s17 = ssub.s32 128, 128
      %18 = vsyncadd [#allocation3], %s17
      %s20 = sshll.u32 [#allocation2], 4
      %s21 = int_to_ptr.vmem [resolvable:$true] %s20
      %23 = dma.hbm_to_vmem [thread:$0]  %s1, 128, %s21, [#allocation3]
    $region9: #{tpu_custom_call.1} parent=1 // pred_fallthru
      _
    // Predicated region
    $region10: #{tpu_custom_call.1} parent=1 // pred_check
      _
    $region11: #{tpu_custom_call.1} parent=1 // pred_check_branch
      %25 = sbr.rel (0) target = $region13
    $region12: #{tpu_custom_call.1} parent=1 // pred_region
      _
    $region13: #{tpu_custom_call.1} parent=1 // pred_fallthru
      _
    // Predicated region
    $region14: #{tpu_custom_call.1} parent=1 // pred_check
      _
    $region15: #{tpu_custom_call.1} parent=1 // pred_check_branch
      %27 = sbr.rel (0) target = $region17
    $region16: #{tpu_custom_call.1} parent=1 // pred_region
      _
    $region17: #{tpu_custom_call.1} parent=1 // pred_fallthru
      _
    // Predicated region
    $region18: #{tpu_custom_call.1} parent=1 // pred_check
      _
    $region19: #{tpu_custom_call.1} parent=1 // pred_check_branch
      %29 = sbr.rel (0) target = $region21
    $region20: #{tpu_custom_call.1} parent=1 // pred_region
      _
    $region21: #{tpu_custom_call.1} parent=1 // pred_fallthru
      _
    // Predicated region
    $region22: #{tpu_custom_call.1} parent=1 // pred_check
      _
    $region23: #{tpu_custom_call.1} parent=1 // pred_check_branch
      %31 = sbr.rel (0) target = $region25
    $region24: #{tpu_custom_call.1} parent=1 // pred_region
      %32 = dma.done [#allocation3], 128
    $region25: #{tpu_custom_call.1} parent=1 // pred_fallthru
      _
    %v33 = vld [vmem:[%s0] sm:$0xff]
    %v34 = vld [vmem:[%s4] sm:$0x1]
    %v35 = vld [vmem:[%s4 + $0x1] sm:$0x1]
    %v36 = vld [vmem:[%s4 + $0x2] sm:$0x1]
    %v37 = vld [vmem:[#allocation2] sm:$0xff]
    %v38 = vlaneseq
    %v39 = vshrl.u32 %v38, 7
    %v40 = vsub.s32 0, %v39
    %v41 = vrot.slane %v34, %v40
    %vm42 = vcmask 64512
    %v44 = vsel %vm42, %v33, 0
    %46 = vmatprep.subr.mxu0 0.0
    %47 = vmatpush1.msra.mxu0 0.0
    %48 = vmatprep.subr.mxu0 0.0
    %49 = vmatpush1.msra.mxu0 0.0
    %50 = vmatprep.subr.mxu0 0.0
    %51 = vmatpush1.msra.mxu0 0.0
    %52 = vmatprep.subr.mxu0 0.0
    %53 = vmatpush1.msra.mxu0 0.0
    %54 = vmatprep.subr.mxu0 0.0
    %55 = vmatpush1.msra.mxu0 0.0
    %56 = vmatprep.subr.mxu0 0.0
    %57 = vmatpush1.msra.mxu0 0.0
    %58 = vmatprep.subr.mxu0 0.0
    %59 = vmatpush1.msra.mxu0 0.0
    %60 = vmatprep.subr.mxu0 0.0
    %61 = vmatpush1.msra.mxu0 0.0
    %62 = vmatprep.subr.mxu0 0.0
    %63 = vmatpush1.msra.mxu0 0.0
    %64 = vmatprep.subr.mxu0 0.0
    %65 = vmatpush1.msra.mxu0 0.0
    %66 = vmatprep.subr.mxu0 0.0
    %67 = vmatpush1.msra.mxu0 0.0
    %68 = vmatprep.subr.mxu0 0.0
    %69 = vmatpush1.msra.mxu0 0.0
    %70 = vmatprep.subr.mxu0 0.0
    %71 = vmatpush1.msra.mxu0 0.0
    %72 = vmatprep.subr.mxu0 0.0
    %73 = vmatpush1.msra.mxu0 0.0
    %74 = vmatprep.subr.mxu0 0.0
    %75 = vmatpush1.msra.mxu0 0.0
    %76 = vmatprep.subr.mxu0 0.0
    %77 = vmatpush1.msra.mxu0 %v37
    %78 = vmatprep.subr.mxu0 0.0
    %79 = vmatpush2.msra.mxu0 0.0
    %80 = vmatprep.subr.mxu0 0.0
    %81 = vmatpush2.msra.mxu0 0.0
    %82 = vmatprep.subr.mxu0 0.0
    %83 = vmatpush2.msra.mxu0 0.0
    %84 = vmatprep.subr.mxu0 0.0
    %85 = vmatpush2.msra.mxu0 0.0
    %86 = vmatprep.subr.mxu0 0.0
    %87 = vmatpush2.msra.mxu0 0.0
    %88 = vmatprep.subr.mxu0 0.0
    %89 = vmatpush2.msra.mxu0 0.0
    %90 = vmatprep.subr.mxu0 0.0
    %91 = vmatpush2.msra.mxu0 0.0
    %92 = vmatprep.subr.mxu0 0.0
    %93 = vmatpush2.msra.mxu0 0.0
    %94 = vmatprep.subr.mxu0 0.0
    %95 = vmatpush2.msra.mxu0 0.0
    %96 = vmatprep.subr.mxu0 0.0
    %97 = vmatpush2.msra.mxu0 0.0
    %98 = vmatprep.subr.mxu0 0.0
    %99 = vmatpush2.msra.mxu0 0.0
    %100 = vmatprep.subr.mxu0 0.0
    %101 = vmatpush2.msra.mxu0 0.0
    %102 = vmatprep.subr.mxu0 0.0
    %103 = vmatpush2.msra.mxu0 0.0
    %104 = vmatprep.subr.mxu0 0.0
    %105 = vmatpush2.msra.mxu0 0.0
    %106 = vmatprep.subr.mxu0 0.0
    %107 = vmatpush2.msra.mxu0 0.0
    %108 = vmatprep.subr.mxu0 0.0
    %109 = vmatpush2.msra.mxu0 0.0
    %110 = vmatprep.mubr.f32.mxu0 0.0
    %111 = vmatmul.mubr.f32.gmra.mxu0 %v44
    %v112 = vpop.f32.mrf.mxu0
    %v113 = vadd.f32 %v41, %v112
    %v114 = vpop.f32.mrf.mxu0
    %115 = vdwg.mxu0
    %v116 = vmax.f32 %v113, 0.0
    %v117 = vld [vmem:[%s2] sm:$0xff]
    %v118 = vld [vmem:[%s2 + $0x8] sm:$0xff]
    %v119 = vld [vmem:[%s2 + $0x10] sm:$0xff]
    %v120 = vld [vmem:[%s2 + $0x18] sm:$0xff]
    %v121 = vld [vmem:[%s2 + $0x20] sm:$0xff]
    %v122 = vld [vmem:[%s2 + $0x28] sm:$0xff]
    %v123 = vld [vmem:[%s2 + $0x30] sm:$0xff]
    %v124 = vld [vmem:[%s2 + $0x38] sm:$0xff]
    %v125 = vld [vmem:[%s2 + $0x40] sm:$0xff]
    %v126 = vld [vmem:[%s2 + $0x48] sm:$0xff]
    %v127 = vld [vmem:[%s2 + $0x50] sm:$0xff]
    %v128 = vld [vmem:[%s2 + $0x58] sm:$0xff]
    %v129 = vld [vmem:[%s2 + $0x60] sm:$0xff]
    %v130 = vld [vmem:[%s2 + $0x68] sm:$0xff]
    %v131 = vld [vmem:[%s2 + $0x70] sm:$0xff]
    %v132 = vld [vmem:[%s2 + $0x78] sm:$0xff]
    %v133 = vlaneseq
    %v134 = vshrl.u32 %v133, 7
    %v135 = vsub.s32 0, %v134
    %v136 = vrot.slane %v35, %v135
    %137 = vmatprep.subr.mxu0 0.0
    %138 = vmatpush1.msra.mxu0 %v132
    %139 = vmatprep.subr.mxu0 0.0
    %140 = vmatpush1.msra.mxu0 %v131
    %141 = vmatprep.subr.mxu0 0.0
    %142 = vmatpush1.msra.mxu0 %v130
    %143 = vmatprep.subr.mxu0 0.0
    %144 = vmatpush1.msra.mxu0 %v129
    %145 = vmatprep.subr.mxu0 0.0
    %146 = vmatpush1.msra.mxu0 %v128
    %147 = vmatprep.subr.mxu0 0.0
    %148 = vmatpush1.msra.mxu0 %v127
    %149 = vmatprep.subr.mxu0 0.0
    %150 = vmatpush1.msra.mxu0 %v126
    %151 = vmatprep.subr.mxu0 0.0
    %152 = vmatpush1.msra.mxu0 %v125
    %153 = vmatprep.subr.mxu0 0.0
    %154 = vmatpush1.msra.mxu0 %v124
    %155 = vmatprep.subr.mxu0 0.0
    %156 = vmatpush1.msra.mxu0 %v123
    %157 = vmatprep.subr.mxu0 0.0
    %158 = vmatpush1.msra.mxu0 %v122
    %159 = vmatprep.subr.mxu0 0.0
    %160 = vmatpush1.msra.mxu0 %v121
    %161 = vmatprep.subr.mxu0 0.0
    %162 = vmatpush1.msra.mxu0 %v120
    %163 = vmatprep.subr.mxu0 0.0
    %164 = vmatpush1.msra.mxu0 %v119
    %165 = vmatprep.subr.mxu0 0.0
    %166 = vmatpush1.msra.mxu0 %v118
    %167 = vmatprep.subr.mxu0 0.0
    %168 = vmatpush1.msra.mxu0 %v117
    %169 = vmatprep.subr.mxu0 0.0
    %170 = vmatpush2.msra.mxu0 0.0
    %171 = vmatprep.subr.mxu0 0.0
    %172 = vmatpush2.msra.mxu0 0.0
    %173 = vmatprep.subr.mxu0 0.0
    %174 = vmatpush2.msra.mxu0 0.0
    %175 = vmatprep.subr.mxu0 0.0
    %176 = vmatpush2.msra.mxu0 0.0
    %177 = vmatprep.subr.mxu0 0.0
    %178 = vmatpush2.msra.mxu0 0.0
    %179 = vmatprep.subr.mxu0 0.0
    %180 = vmatpush2.msra.mxu0 0.0
    %181 = vmatprep.subr.mxu0 0.0
    %182 = vmatpush2.msra.mxu0 0.0
    %183 = vmatprep.subr.mxu0 0.0
    %184 = vmatpush2.msra.mxu0 0.0
    %185 = vmatprep.subr.mxu0 0.0
    %186 = vmatpush2.msra.mxu0 0.0
    %187 = vmatprep.subr.mxu0 0.0
    %188 = vmatpush2.msra.mxu0 0.0
    %189 = vmatprep.subr.mxu0 0.0
    %190 = vmatpush2.msra.mxu0 0.0
    %191 = vmatprep.subr.mxu0 0.0
    %192 = vmatpush2.msra.mxu0 0.0
    %193 = vmatprep.subr.mxu0 0.0
    %194 = vmatpush2.msra.mxu0 0.0
    %195 = vmatprep.subr.mxu0 0.0
    %196 = vmatpush2.msra.mxu0 0.0
    %197 = vmatprep.subr.mxu0 0.0
    %198 = vmatpush2.msra.mxu0 0.0
    %199 = vmatprep.subr.mxu0 0.0
    %200 = vmatpush2.msra.mxu0 0.0
    %201 = vmatprep.mubr.f32.mxu0 0.0
    %202 = vmatmul.mubr.f32.gmra.mxu0 %v116
    %v203 = vpop.f32.mrf.mxu0
    %v204 = vadd.f32 %v136, %v203
    %v205 = vpop.f32.mrf.mxu0
    %206 = vdwg.mxu0
    %v207 = vmax.f32 %v204, 0.0
    %v208 = vld [vmem:[%s3] sm:$0xff]
    %v209 = vld [vmem:[%s3 + $0x8] sm:$0xff]
    %v210 = vld [vmem:[%s3 + $0x10] sm:$0xff]
    %v211 = vld [vmem:[%s3 + $0x18] sm:$0xff]
    %v212 = vld [vmem:[%s3 + $0x20] sm:$0xff]
    %v213 = vld [vmem:[%s3 + $0x28] sm:$0xff]
    %v214 = vld [vmem:[%s3 + $0x30] sm:$0xff]
    %v215 = vld [vmem:[%s3 + $0x38] sm:$0xff]
    %v216 = vld [vmem:[%s3 + $0x40] sm:$0xff]
    %v217 = vld [vmem:[%s3 + $0x48] sm:$0xff]
    %v218 = vld [vmem:[%s3 + $0x50] sm:$0xff]
    %v219 = vld [vmem:[%s3 + $0x58] sm:$0xff]
    %v220 = vld [vmem:[%s3 + $0x60] sm:$0xff]
    %v221 = vld [vmem:[%s3 + $0x68] sm:$0xff]
    %v222 = vld [vmem:[%s3 + $0x70] sm:$0xff]
    %v223 = vld [vmem:[%s3 + $0x78] sm:$0xff]
    %v224 = vlaneseq
    %v225 = vshrl.u32 %v224, 7
    %v226 = vsub.s32 0, %v225
    %v227 = vrot.slane %v36, %v226
    %228 = vmatprep.subr.mxu0 0.0
    %229 = vmatpush1.msra.mxu0 %v223
    %230 = vmatprep.subr.mxu0 0.0
    %231 = vmatpush1.msra.mxu0 %v222
    %232 = vmatprep.subr.mxu0 0.0
    %233 = vmatpush1.msra.mxu0 %v221
    %234 = vmatprep.subr.mxu0 0.0
    %235 = vmatpush1.msra.mxu0 %v220
    %236 = vmatprep.subr.mxu0 0.0
    %237 = vmatpush1.msra.mxu0 %v219
    %238 = vmatprep.subr.mxu0 0.0
    %239 = vmatpush1.msra.mxu0 %v218
    %240 = vmatprep.subr.mxu0 0.0
    %241 = vmatpush1.msra.mxu0 %v217
    %242 = vmatprep.subr.mxu0 0.0
    %243 = vmatpush1.msra.mxu0 %v216
    %244 = vmatprep.subr.mxu0 0.0
    %245 = vmatpush1.msra.mxu0 %v215
    %246 = vmatprep.subr.mxu0 0.0
    %247 = vmatpush1.msra.mxu0 %v214
    %248 = vmatprep.subr.mxu0 0.0
    %249 = vmatpush1.msra.mxu0 %v213
    %250 = vmatprep.subr.mxu0 0.0
    %251 = vmatpush1.msra.mxu0 %v212
    %252 = vmatprep.subr.mxu0 0.0
    %253 = vmatpush1.msra.mxu0 %v211
    %254 = vmatprep.subr.mxu0 0.0
    %255 = vmatpush1.msra.mxu0 %v210
    %256 = vmatprep.subr.mxu0 0.0
    %257 = vmatpush1.msra.mxu0 %v209
    %258 = vmatprep.subr.mxu0 0.0
    %259 = vmatpush1.msra.mxu0 %v208
    %260 = vmatprep.subr.mxu0 0.0
    %261 = vmatpush2.msra.mxu0 0.0
    %262 = vmatprep.subr.mxu0 0.0
    %263 = vmatpush2.msra.mxu0 0.0
    %264 = vmatprep.subr.mxu0 0.0
    %265 = vmatpush2.msra.mxu0 0.0
    %266 = vmatprep.subr.mxu0 0.0
    %267 = vmatpush2.msra.mxu0 0.0
    %268 = vmatprep.subr.mxu0 0.0
    %269 = vmatpush2.msra.mxu0 0.0
    %270 = vmatprep.subr.mxu0 0.0
    %271 = vmatpush2.msra.mxu0 0.0
    %272 = vmatprep.subr.mxu0 0.0
    %273 = vmatpush2.msra.mxu0 0.0
    %274 = vmatprep.subr.mxu0 0.0
    %275 = vmatpush2.msra.mxu0 0.0
    %276 = vmatprep.subr.mxu0 0.0
    %277 = vmatpush2.msra.mxu0 0.0
    %278 = vmatprep.subr.mxu0 0.0
    %279 = vmatpush2.msra.mxu0 0.0
    %280 = vmatprep.subr.mxu0 0.0
    %281 = vmatpush2.msra.mxu0 0.0
    %282 = vmatprep.subr.mxu0 0.0
    %283 = vmatpush2.msra.mxu0 0.0
    %284 = vmatprep.subr.mxu0 0.0
    %285 = vmatpush2.msra.mxu0 0.0
    %286 = vmatprep.subr.mxu0 0.0
    %287 = vmatpush2.msra.mxu0 0.0
    %288 = vmatprep.subr.mxu0 0.0
    %289 = vmatpush2.msra.mxu0 0.0
    %290 = vmatprep.subr.mxu0 0.0
    %291 = vmatpush2.msra.mxu0 0.0
    %292 = vmatprep.mubr.f32.mxu0 0.0
    %293 = vmatmul.mubr.f32.gmra.mxu0 %v207
    %v294 = vpop.f32.mrf.mxu0
    %v295 = vadd.f32 %v227, %v294
    %v296 = vpop.f32.mrf.mxu0
    %297 = vdwg.mxu0
    %v298 = vlaneseq
    %v299 = vand.u32 %v298, 127
    %v300 = vmax.f32 %v295, 1e-06
    %v301 = vmin.f32 %v300, 1.0
    %vm302 = vcmp.ge.s32.totalorder %v299, 4
    %v303 = vsel %vm302, %v301, %v295
    %304 = vst.msk [vmem:[#allocation5] sm:$0xff] %vm42, %v303
    // Predicated region
    $region26: #{tpu_custom_call.1} parent=1 // pred_check
      _
    $region27: #{tpu_custom_call.1} parent=1 // pred_check_branch
      %306 = sbr.rel (0) target = $region29
    $region28: #{tpu_custom_call.1} parent=1 // pred_region
      %s308 = ssub.s32 128, 128
      %309 = vsyncadd [#allocation4], %s308
      %s311 = sshll.u32 [#allocation5], 4
      %s312 = int_to_ptr.vmem [resolvable:$true] %s311
      %314 = dma.vmem_to_hbm [thread:$0]  %s312, 128, %s5, [#allocation4]
    $region29: #{tpu_custom_call.1} parent=1 // pred_fallthru
      _
    // Predicated region
    $region30: #{tpu_custom_call.1} parent=1 // pred_check
      _
    $region31: #{tpu_custom_call.1} parent=1 // pred_check_branch
      %316 = sbr.rel (0) target = $region33
    $region32: #{tpu_custom_call.1} parent=1 // pred_region
      %317 = dma.done [#allocation4], 128
    $region33: #{tpu_custom_call.1} parent=1 // pred_fallthru
      _
    %318 = vsyncpa [#allocation3], 1
    %319 = vsyncpa [#allocation4], 1

</llo_original>
